<compile_context>
chip_gen: v7x
topology: tpu7x:2x2x1
jax: 0.10.0
libtpu: 0.0.40
codegen_flags: <defaults>
</compile_context>

<pallas_src>
import math

import jax
import jax.numpy as jnp
from jax.experimental import pallas as pl
from jax.experimental.pallas import tpu as pltpu


def _round_up(x, m):
    return ((x + m - 1) // m) * m


# --------------------------------------------------------------------------
# Pallas kernels
# --------------------------------------------------------------------------
def _mm_bias_prelu_kernel(x_ref, w_ref, b_ref, a_ref, o_ref, acc_ref):
    """Tiled matmul with f32 accumulator and fused bias + PReLU epilogue."""
    @pl.when(pl.program_id(2) == 0)
    def _():
        acc_ref[...] = jnp.zeros_like(acc_ref)

    acc_ref[...] += jnp.dot(x_ref[...], w_ref[...],
                            preferred_element_type=jnp.float32)

    @pl.when(pl.program_id(2) == pl.num_programs(2) - 1)
    def _():
        y = acc_ref[...] + b_ref[...]
        o_ref[...] = jnp.where(y >= 0.0, y, a_ref[...] * y)


def _resize_kernel(ah_ref, awt_ref, x_ref, o_ref):
    """Separable bilinear resize of one (H, W) slab: A_h @ x @ A_w^T."""
    t = jnp.dot(ah_ref[...], x_ref[0], preferred_element_type=jnp.float32)
    o_ref[0] = jnp.dot(t, awt_ref[...], preferred_element_type=jnp.float32)


def _nedt_kernel(gp_ref, o_ref):
    """Sobel edge magnitude squashed to [0, 1) — pure VPU stencil."""
    H, W = o_ref.shape[1], o_ref.shape[2]
    g = gp_ref[0]                                     # (H+2, W+2)

    def tap(di, dj):
        return g[di:di + H, dj:dj + W]

    gx = (tap(0, 2) + 2.0 * tap(1, 2) + tap(2, 2)) \
        - (tap(0, 0) + 2.0 * tap(1, 0) + tap(2, 0))
    gy = (tap(2, 0) + 2.0 * tap(2, 1) + tap(2, 2)) \
        - (tap(0, 0) + 2.0 * tap(0, 1) + tap(0, 2))
    mag = jnp.sqrt(gx * gx + gy * gy + 1e-12)
    o_ref[0] = 1.0 - jnp.exp(-mag)


def _zmetric_kernel(ref_ref, warped_ref, z_ref):
    """z = -mean_c |ref - warped|  — lane-dense (1, 1, P) output."""
    d = jnp.abs(ref_ref[...] - warped_ref[...])       # (1, C, P)
    z_ref[...] = -jnp.mean(d, axis=1, keepdims=True)  # (1, 1, P)


def _splat_prepare_kernel(x_ref, z_ref, o_ref):
    """Emit [exp(z)*x ; exp(z)] as one (C+1, P) slab (fused num+den)."""
    C = x_ref.shape[1]
    w = jnp.exp(z_ref[...])                           # (1, 1, P)
    o_ref[:, :C, :] = x_ref[...] * w
    o_ref[:, C:, :] = w


def _splat_norm_kernel(acc_ref, o_ref):
    """out = num / (den + eps) with the divide on the EUP."""
    C = o_ref.shape[1]
    num = acc_ref[:, :C, :]
    den = acc_ref[:, C:, :]
    o_ref[...] = num * pl.reciprocal(den + 1e-7, approx=True)


# --------------------------------------------------------------------------
# pallas_call wrappers
# --------------------------------------------------------------------------
def pallas_matmul_bias_prelu(x, w, b, alpha):
    """y = PReLU(x @ w + b), tiled, bf16 operands, f32 accumulate."""
    M, K = x.shape
    _, N = w.shape
    tm = min(256, _round_up(M, 8))
    tk = min(512, _round_up(K, 128))
    tn = min(256, _round_up(N, 128))
    Mp, Kp, Np = _round_up(M, tm), _round_up(K, tk), _round_up(N, tn)

    xp = jnp.zeros((Mp, Kp), jnp.bfloat16).at[:M, :K].set(x.astype(jnp.bfloat16))
    wp = jnp.zeros((Kp, Np), jnp.bfloat16).at[:K, :N].set(w.astype(jnp.bfloat16))
    bp = jnp.zeros((1, Np), jnp.float32).at[:, :N].set(
        b.reshape(1, N).astype(jnp.float32))
    ap = jnp.zeros((1, Np), jnp.float32).at[:, :N].set(
        alpha.reshape(1, N).astype(jnp.float32))

    out = pl.pallas_call(
        _mm_bias_prelu_kernel,
        out_shape=jax.ShapeDtypeStruct((Mp, Np), jnp.float32),
        grid=(Mp // tm, Np // tn, Kp // tk),
        in_specs=[pl.BlockSpec((tm, tk), lambda i, j, k: (i, k)),
                  pl.BlockSpec((tk, tn), lambda i, j, k: (k, j)),
                  pl.BlockSpec((1, tn), lambda i, j, k: (0, j)),
                  pl.BlockSpec((1, tn), lambda i, j, k: (0, j))],
        out_specs=pl.BlockSpec((tm, tn), lambda i, j, k: (i, j)),
        scratch_shapes=[pltpu.VMEM((tm, tn), jnp.float32)],
        compiler_params=pltpu.CompilerParams(
            dimension_semantics=("parallel", "parallel", "arbitrary")),
    )(xp, wp, bp, ap)
    return out[:M, :N]


def pallas_nedt_edge(gray_padded, H, W):
    B = gray_padded.shape[0]
    return pl.pallas_call(
        _nedt_kernel,
        out_shape=jax.ShapeDtypeStruct((B, H, W), jnp.float32),
        grid=(B,),
        in_specs=[pl.BlockSpec((1, H + 2, W + 2), lambda b: (b, 0, 0))],
        out_specs=pl.BlockSpec((1, H, W), lambda b: (b, 0, 0)),
        compiler_params=pltpu.CompilerParams(dimension_semantics=("parallel",)),
    )(gray_padded.astype(jnp.float32))


def pallas_zmetric(ref_f, warped_f):
    B, C, P = ref_f.shape
    return pl.pallas_call(
        _zmetric_kernel,
        out_shape=jax.ShapeDtypeStruct((B, 1, P), jnp.float32),
        grid=(B,),
        in_specs=[pl.BlockSpec((1, C, P), lambda b: (b, 0, 0)),
                  pl.BlockSpec((1, C, P), lambda b: (b, 0, 0))],
        out_specs=pl.BlockSpec((1, 1, P), lambda b: (b, 0, 0)),
        compiler_params=pltpu.CompilerParams(dimension_semantics=("parallel",)),
    )(ref_f.astype(jnp.float32), warped_f.astype(jnp.float32))


def pallas_splat_prepare(x_f, z_f):
    B, C, P = x_f.shape
    return pl.pallas_call(
        _splat_prepare_kernel,
        out_shape=jax.ShapeDtypeStruct((B, C + 1, P), jnp.float32),
        grid=(B,),
        in_specs=[pl.BlockSpec((1, C, P), lambda b: (b, 0, 0)),
                  pl.BlockSpec((1, 1, P), lambda b: (b, 0, 0))],
        out_specs=pl.BlockSpec((1, C + 1, P), lambda b: (b, 0, 0)),
        compiler_params=pltpu.CompilerParams(dimension_semantics=("parallel",)),
    )(x_f.astype(jnp.float32), z_f.astype(jnp.float32))


def pallas_splat_normalize(acc, C):
    B, Cp1, P = acc.shape
    return pl.pallas_call(
        _splat_norm_kernel,
        out_shape=jax.ShapeDtypeStruct((B, C, P), jnp.float32),
        grid=(B,),
        in_specs=[pl.BlockSpec((1, Cp1, P), lambda b: (b, 0, 0))],
        out_specs=pl.BlockSpec((1, C, P), lambda b: (b, 0, 0)),
        compiler_params=pltpu.CompilerParams(dimension_semantics=("parallel",)),
    )(acc.astype(jnp.float32))


# --------------------------------------------------------------------------
# Bilinear resize (separable matmuls inside one Pallas kernel)
# --------------------------------------------------------------------------
def resize_axis_matrix(out_size, in_size):
    # PyTorch interpolate(..., mode='bilinear', align_corners=False), no AA
    scale = in_size / out_size
    i = jnp.arange(out_size, dtype=jnp.float32)
    src = jnp.clip((i + 0.5) * scale - 0.5, 0.0, in_size - 1)
    i0 = jnp.floor(src)
    d = src - i0
    i0 = i0.astype(jnp.int32)
    i1 = jnp.minimum(i0 + 1, in_size - 1)
    A = jnp.zeros((out_size, in_size), jnp.float32)
    A = A.at[jnp.arange(out_size), i0].add(1.0 - d)
    A = A.at[jnp.arange(out_size), i1].add(d)
    return A


def resize_bilinear(x, OH, OW):
    B, C, H, W = x.shape
    if (OH, OW) == (H, W):
        return x
    OHp = max(8, _round_up(OH, 8))
    OWp = max(128, _round_up(OW, 128))
    Ah = jnp.zeros((OHp, H), jnp.float32).at[:OH, :].set(resize_axis_matrix(OH, H))
    AwT = jnp.zeros((W, OWp), jnp.float32).at[:, :OW].set(
        resize_axis_matrix(OW, W).T)
    xf = x.reshape(B * C, H, W).astype(jnp.float32)
    y = pl.pallas_call(
        _resize_kernel,
        out_shape=jax.ShapeDtypeStruct((B * C, OHp, OWp), jnp.float32),
        grid=(B * C,),
        in_specs=[pl.BlockSpec((OHp, H), lambda i: (0, 0)),
                  pl.BlockSpec((W, OWp), lambda i: (0, 0)),
                  pl.BlockSpec((1, H, W), lambda i: (i, 0, 0))],
        out_specs=pl.BlockSpec((1, OHp, OWp), lambda i: (i, 0, 0)),
        compiler_params=pltpu.CompilerParams(dimension_semantics=("parallel",)),
    )(Ah, AwT, xf)
    return y[:, :OH, :OW].reshape(B, C, OH, OW)


# --------------------------------------------------------------------------
# Sparse warp helpers (indexed gather / scatter — no dense P x P matrices)
# --------------------------------------------------------------------------
def _corner_terms(flow, H, W):
    """Per-corner (clipped flat index, validity-masked weight) lists."""
    B = flow.shape[0]
    ys, xs = jnp.meshgrid(jnp.arange(H, dtype=jnp.float32),
                          jnp.arange(W, dtype=jnp.float32), indexing="ij")
    sx = xs[None] + flow[:, 0]
    sy = ys[None] + flow[:, 1]
    x0 = jnp.floor(sx)
    y0 = jnp.floor(sy)
    dx = sx - x0
    dy = sy - y0
    out = []
    for cy, cx, wgt in ((y0, x0, (1 - dx) * (1 - dy)),
                        (y0, x0 + 1, dx * (1 - dy)),
                        (y0 + 1, x0, (1 - dx) * dy),
                        (y0 + 1, x0 + 1, dx * dy)):
        valid = ((cx >= 0) & (cx <= W - 1) &
                 (cy >= 0) & (cy <= H - 1)).astype(jnp.float32)
        idx = (jnp.clip(cy, 0, H - 1) * W +
               jnp.clip(cx, 0, W - 1)).astype(jnp.int32).reshape(B, H * W)
        out.append((idx, (wgt * valid).reshape(B, H * W)))
    return out


def backward_warp(src, flow):
    """Bilinear backward warp (4-corner gather).  src, out: (B, C, H, W)."""
    # TODO(synk): gather has data-dependent indices; kept as an XLA gather
    # rather than a Pallas kernel (no clean TPU Pallas gather primitive here).
    B, C, H, W = src.shape
    P = H * W
    src_flat = src.reshape(B, C, P)
    out = jnp.zeros((B, C, P), jnp.float32)
    for idx, w in _corner_terms(flow, H, W):
        g = jnp.take_along_axis(
            src_flat, jnp.broadcast_to(idx[:, None, :], (B, C, P)), axis=2)
        out = out + w[:, None, :] * g
    return out.reshape(B, C, H, W)


def forward_splat_scatter(vals, flow, H, W):
    """Bilinear forward splat (4-corner scatter-add).  vals: (B, Cp1, P)."""
    # TODO(synk): scatter-add with data-dependent destination indices is done
    # with XLA .at[].add — there is no clean Pallas TPU scatter primitive.
    B, Cp1, P = vals.shape
    acc = jnp.zeros((B, Cp1, P), jnp.float32)
    scatter = jax.vmap(lambda a, v, i, w: a.at[:, i].add(v * w[None, :]))
    for idx, w in _corner_terms(flow, H, W):
        acc = scatter(acc, vals, idx, w)
    return acc


# --------------------------------------------------------------------------
# Sub-modules (re-implemented; original sources not provided)
# --------------------------------------------------------------------------
def nedt(x):
    # TODO(synk): exact NEDT definition unavailable; approximated as a
    # 1-channel Sobel edge-magnitude map squashed to [0, 1).
    B, _, H, W = x.shape
    gray = jnp.mean(x, axis=1)                              # (B, H, W)
    gp = jnp.pad(gray, ((0, 0), (1, 1), (1, 1)))            # (B, H+2, W+2)
    e = pallas_nedt_edge(gp, H, W)
    return e[:, None, :, :]


def im2col(x, k, stride, pad):
    # TODO(synk): im2col still round-trips a 9x-expanded tensor through HBM;
    # an in-kernel halo patch expansion would remove that traffic.
    B, C, H, W = x.shape
    xp = jnp.pad(x, ((0, 0), (0, 0), (pad, pad), (pad, pad)))
    OH = (H + 2 * pad - k) // stride + 1
    OW = (W + 2 * pad - k) // stride + 1
    cols = []
    for di in range(k):
        for dj in range(k):
            cols.append(xp[:, :, di:di + stride * OH:stride,
                           dj:dj + stride * OW:stride])
    col = jnp.stack(cols, axis=2)                   # (B, C, k*k, OH, OW)
    col = col.transpose(0, 3, 4, 1, 2).reshape(B * OH * OW, C * k * k)
    return col, OH, OW


def conv2d_prelu(x, w, b, alpha, stride=2, pad=1):
    B, Cin, H, W = x.shape
    Cout = w.shape[0]
    col, OH, OW = im2col(x, 3, stride, pad)          # (B*OH*OW, Cin*9)
    wmat = w.reshape(Cout, Cin * 9).T                # (Cin*9, Cout)
    y = pallas_matmul_bias_prelu(col, wmat, b, alpha)
    return y.reshape(B, OH, OW, Cout).transpose(0, 3, 1, 2)


def extractor(params, x):
    # TODO(synk): Extractor assumed to be a stride-2 3x3 conv + PReLU pyramid.
    feats = []
    for (w, b, a) in params:
        x = conv2d_prelu(x, w, b, a)
        feats.append(x)
    return feats


def z_metric(I0, I1, flow0to1, flow1to0):
    # TODO(synk): z-metric coefficient unknown; using -mean_c|I0 - warp(I1)|.
    B, C, H, W = I0.shape
    P = H * W
    warped1 = backward_warp(I1, flow0to1).reshape(B, C, P)
    warped0 = backward_warp(I0, flow1to0).reshape(B, C, P)
    z01 = pallas_zmetric(I0.reshape(B, C, P), warped1)
    z10 = pallas_zmetric(I1.reshape(B, C, P), warped0)
    return z01.reshape(B, 1, H, W), z10.reshape(B, 1, H, W)


def half_warp(img, flow, z):
    """Softmax-splatting forward warp (indexed scatter, normalize in Pallas)."""
    B, C, H, W = img.shape
    P = H * W
    prep = pallas_splat_prepare(img.reshape(B, C, P), z.reshape(B, 1, P))
    acc = forward_splat_scatter(prep, flow, H, W)
    out = pallas_splat_normalize(acc, C)
    return out.reshape(B, C, H, W)


# --------------------------------------------------------------------------
# FeatureWarper forward
# --------------------------------------------------------------------------
def feature_warper_forward(params, I0, I1, flow0to1, flow1to0, tau):
    assert tau.shape == (I0.shape[0], 2), "tau shape must be (batch, 2)"
    flow0tot = tau[:, 0][:, None, None, None] * flow0to1
    flow1tot = tau[:, 1][:, None, None, None] * flow1to0

    I0c = jnp.concatenate([I0, nedt(I0)], axis=1)
    I1c = jnp.concatenate([I1, nedt(I1)], axis=1)

    z0to1, z1to0 = z_metric(I0c, I1c, flow0to1, flow1to0)
    base0 = half_warp(I0c, flow0tot, z0to1)
    base1 = half_warp(I1c, flow1tot, z1to0)
    warped0, warped1 = [base0], [base1]

    feats0 = extractor(params, I0c)
    feats1 = extractor(params, I1c)
    for ft0, ft1 in zip(feats0, feats1):
        OH, OW = ft0.shape[2], ft0.shape[3]
        f0 = resize_bilinear(flow0tot, OH, OW)
        f1 = resize_bilinear(flow1tot, OH, OW)
        z0 = resize_bilinear(z0to1, OH, OW)
        z1 = resize_bilinear(z1to0, OH, OW)
        warped0.append(half_warp(ft0, f0, z0))
        warped1.append(half_warp(ft1, f1, z1))
    return warped0, warped1


def init_params(key, channels):
    params = []
    for i in range(len(channels) - 1):
        key, k1 = jax.random.split(key)
        cin, cout = channels[i], channels[i + 1]
        w = jax.random.normal(k1, (cout, cin, 3, 3), jnp.float32) \
            * math.sqrt(2.0 / (cin * 9))
        b = jnp.zeros((cout,), jnp.float32)
        a = jnp.full((cout,), 0.25, jnp.float32)   # PReLU per-channel slope
        params.append((w, b, a))
    return params


if __name__ == "__main__":
    key = jax.random.PRNGKey(0)
    kI0, kI1, kf0, kf1, kt, kp = jax.random.split(key, 6)

    B, Cin, H, W = 2, 3, 16, 16
    I0 = jax.random.normal(kI0, (B, Cin, H, W), jnp.float32)
    I1 = jax.random.normal(kI1, (B, Cin, H, W), jnp.float32)
    flow0to1 = 2.0 * jax.random.normal(kf0, (B, 2, H, W), jnp.float32)
    flow1to0 = 2.0 * jax.random.normal(kf1, (B, 2, H, W), jnp.float32)
    tau = jax.random.uniform(kt, (B, 2), jnp.float32)

    params = init_params(kp, [Cin + 1, 32, 64, 128, 256])

    warped0, warped1 = feature_warper_forward(
        params, I0, I1, flow0to1, flow1to0, tau)

    for t in warped0 + warped1:
        jax.block_until_ready(t)
    print("KERNEL_OK")
</pallas_src>

<mosaic_0001>
module attributes {stable_mosaic.version = 11 : i64} {
  func.func @_nedt_kernel(%arg0: i32, %arg1: memref<1x18x18xf32, #tpu.memory_space<vmem>>, %arg2: memref<1x16x16xf32, #tpu.memory_space<vmem>>) attributes {dimension_semantics = [#tpu.dimension_semantics<parallel>], iteration_bounds = array<i64: 2>, scalar_prefetch = 0 : i64, scratch_operands = 0 : i64, tpu.core_type = #tpu.core_type<tc>, window_params = [{transform_indices = @transform_0, window_bounds = array<i64: 1, 18, 18>}, {transform_indices = @transform_1, window_bounds = array<i64: 1, 16, 16>}]} {
    %c0 = arith.constant 0 : index
    %c0_0 = arith.constant 0 : index
    %c0_1 = arith.constant 0 : index
    %0 = vector.load %arg1[%c0, %c0_0, %c0_1] : memref<1x18x18xf32, #tpu.memory_space<vmem>>, vector<1x18x18xf32>
    %1 = vector.shape_cast %0 : vector<1x18x18xf32> to vector<18x18xf32>
    %2 = vector.extract_strided_slice %1 {offsets = [0, 2], sizes = [16, 16], strides = [1, 1]} : vector<18x18xf32> to vector<16x16xf32>
    %3 = vector.extract_strided_slice %1 {offsets = [1, 2], sizes = [16, 16], strides = [1, 1]} : vector<18x18xf32> to vector<16x16xf32>
    %cst = arith.constant 2.000000e+00 : f32
    %4 = vector.broadcast %cst : f32 to vector<16x16xf32>
    %5 = arith.mulf %4, %3 : vector<16x16xf32>
    %6 = arith.addf %2, %5 : vector<16x16xf32>
    %7 = vector.extract_strided_slice %1 {offsets = [2, 2], sizes = [16, 16], strides = [1, 1]} : vector<18x18xf32> to vector<16x16xf32>
    %8 = arith.addf %6, %7 : vector<16x16xf32>
    %9 = vector.extract_strided_slice %1 {offsets = [0, 0], sizes = [16, 16], strides = [1, 1]} : vector<18x18xf32> to vector<16x16xf32>
    %10 = vector.extract_strided_slice %1 {offsets = [1, 0], sizes = [16, 16], strides = [1, 1]} : vector<18x18xf32> to vector<16x16xf32>
    %cst_2 = arith.constant 2.000000e+00 : f32
    %11 = vector.broadcast %cst_2 : f32 to vector<16x16xf32>
    %12 = arith.mulf %11, %10 : vector<16x16xf32>
    %13 = arith.addf %9, %12 : vector<16x16xf32>
    %14 = vector.extract_strided_slice %1 {offsets = [2, 0], sizes = [16, 16], strides = [1, 1]} : vector<18x18xf32> to vector<16x16xf32>
    %15 = arith.addf %13, %14 : vector<16x16xf32>
    %16 = arith.subf %8, %15 : vector<16x16xf32>
    %17 = vector.extract_strided_slice %1 {offsets = [2, 0], sizes = [16, 16], strides = [1, 1]} : vector<18x18xf32> to vector<16x16xf32>
    %18 = vector.extract_strided_slice %1 {offsets = [2, 1], sizes = [16, 16], strides = [1, 1]} : vector<18x18xf32> to vector<16x16xf32>
    %cst_3 = arith.constant 2.000000e+00 : f32
    %19 = vector.broadcast %cst_3 : f32 to vector<16x16xf32>
    %20 = arith.mulf %19, %18 : vector<16x16xf32>
    %21 = arith.addf %17, %20 : vector<16x16xf32>
    %22 = vector.extract_strided_slice %1 {offsets = [2, 2], sizes = [16, 16], strides = [1, 1]} : vector<18x18xf32> to vector<16x16xf32>
    %23 = arith.addf %21, %22 : vector<16x16xf32>
    %24 = vector.extract_strided_slice %1 {offsets = [0, 0], sizes = [16, 16], strides = [1, 1]} : vector<18x18xf32> to vector<16x16xf32>
    %25 = vector.extract_strided_slice %1 {offsets = [0, 1], sizes = [16, 16], strides = [1, 1]} : vector<18x18xf32> to vector<16x16xf32>
    %cst_4 = arith.constant 2.000000e+00 : f32
    %26 = vector.broadcast %cst_4 : f32 to vector<16x16xf32>
    %27 = arith.mulf %26, %25 : vector<16x16xf32>
    %28 = arith.addf %24, %27 : vector<16x16xf32>
    %29 = vector.extract_strided_slice %1 {offsets = [0, 2], sizes = [16, 16], strides = [1, 1]} : vector<18x18xf32> to vector<16x16xf32>
    %30 = arith.addf %28, %29 : vector<16x16xf32>
    %31 = arith.subf %23, %30 : vector<16x16xf32>
    %32 = arith.mulf %16, %16 : vector<16x16xf32>
    %33 = arith.mulf %31, %31 : vector<16x16xf32>
    %34 = arith.addf %32, %33 : vector<16x16xf32>
    %cst_5 = arith.constant 9.99999996E-13 : f32
    %35 = vector.broadcast %cst_5 : f32 to vector<16x16xf32>
    %36 = arith.addf %34, %35 : vector<16x16xf32>
    %37 = math.sqrt %36 : vector<16x16xf32>
    %cst_6 = arith.constant 0.000000e+00 : f32
    %38 = vector.broadcast %cst_6 : f32 to vector<16x16xf32>
    %39 = arith.subf %38, %37 : vector<16x16xf32>
    %40 = math.exp %39 : vector<16x16xf32>
    %cst_7 = arith.constant 1.000000e+00 : f32
    %41 = vector.broadcast %cst_7 : f32 to vector<16x16xf32>
    %42 = arith.subf %41, %40 : vector<16x16xf32>
    %c0_8 = arith.constant 0 : index
    %c0_9 = arith.constant 0 : index
    %c0_10 = arith.constant 0 : index
    %43 = vector.load %arg2[%c0_8, %c0_9, %c0_10] : memref<1x16x16xf32, #tpu.memory_space<vmem>>, vector<1x16x16xf32>
    %44 = vector.shape_cast %43 : vector<1x16x16xf32> to vector<16x16xf32>
    %45 = vector.shape_cast %42 : vector<16x16xf32> to vector<1x16x16xf32>
    tpu.vector_store %arg2[%c0_8, %c0_9, %c0_10], %45 {strides = array<i32>} : memref<1x16x16xf32, #tpu.memory_space<vmem>>, vector<1x16x16xf32>,
    return
  }
  func.func @transform_0(%arg0: i32) -> (i32, i32, i32) {
    %c0_i32 = arith.constant 0 : i32
    %c0_i32_0 = arith.constant 0 : i32
    %c0_i32_1 = arith.constant 0 : i32
    return %arg0, %c0_i32, %c0_i32_0 : i32, i32, i32
  }
  func.func @transform_1(%arg0: i32) -> (i32, i32, i32) {
    %c0_i32 = arith.constant 0 : i32
    %c0_i32_0 = arith.constant 0 : i32
    %c0_i32_1 = arith.constant 0 : i32
    return %arg0, %c0_i32, %c0_i32_0 : i32, i32, i32
  }
}

</mosaic_0001>

<llo_original>
// kernel: tpu_custom_call.1
$region0: #{tpu_custom_call.1}
  #allocation0 [shape = 'u32[]', space=smem, size = 0x4, offset = 0x4, fixed_abs, tag = 'smem constant byte address 0x4 - core index']
  #allocation1 [shape = 'u32[144,128]{1,0:T(1,128)}', space=vmem, size = 0x12000, scoped, tag = 'internal scratch']
  %s0 = inlined_call_operand.vmem [shape: f32[2,18,18], index: 0, kind: input, shape index: {}]
  %s1 = inlined_call_operand.hbm [shape: f32[2,16,16], index: 1, kind: output, shape index: {}]
  %s2 = sld [smem:[#allocation0]]
  $region37: #{tpu_custom_call.1} parent=0
    _
  %s4 = ssub.s32 1, %s2
  %s5 = scalar_select 0, %s4, %s2
  $region1: #{tpu_custom_call.1} parent=0
    #allocation2 [shape = 'u8[16384]{0}', space=vmem, size = 0x4000, scoped, tag = 'output window, operand 0']
    #allocation3 [shape = 's32[2]{0}', space=sflag, size = 0x8, scoped, tag = 'scoped memory for tpu_custom_call.1']
    %6 = vsyncpa [#allocation3], 0
    %s7 = scalar_lea.sflag [#allocation3], 1
    %8 = vsyncpa %s7, 0
    loop: start=0, step=1, limit=4
    $region2: #{tpu_custom_call.1} parent=1 // loop_pre_header
      _
    $region3: #{tpu_custom_call.1} parent=1 // loop_header
      %s10 = sphi 0, %s14
      %p11 = scmp.ge.s32.totalorder %s10, 4
      %s20 = sphi 0, %s22
      %s23 = sphi 0, %s20
      %s24 = sphi 0, %s23
      %s40 = sphi 0, %s24
      %s46 = sphi 0, %s48
      %s49 = sphi 0, %s46
      %s50 = sphi 0, %s49
      %s66 = sphi 0, %s50
    $region4: #{tpu_custom_call.1} parent=1 // loop_header_branch
      %13 = sbr.rel (%p11) target = $region8
    $region5: #{tpu_custom_call.1} parent=1 // loop_body
      %s15 = ssub.s32 %s10, 1
      %s16 = ssub.s32 %s10, 2
      %s17 = sadd.s32 %s10, 1
      %s18 = ssub.s32 %s10, %s17
      %p19 = scmp.eq.s32.totalorder %s18, 0
      %s21 = sadd.s32 %s20, 1
      %s22 = scalar_select %p19, %s20, %s21
      %p25 = pneg %p19
      %p26 = scmp.eq.s32.totalorder %s10, 1
      %p27 = por %p25, %p26
      %p28 = scmp.ne.s32.totalorder %s20, %s23
      %p29 = scmp.eq.s32.totalorder %s10, 0
      %p30 = por %p28, %p29
      %p31 = scmp.ne.s32.totalorder %s20, %s23
      %p32 = scmp.eq.s32.totalorder %s15, 1
      %p33 = por %p31, %p32
      %p34 = scmp.ne.s32.totalorder %s23, %s24
      %p35 = scmp.eq.s32.totalorder %s15, 0
      %p36 = por %p34, %p35
      %p37 = scmp.ne.s32.totalorder %s23, %s24
      %p38 = scmp.eq.s32.totalorder %s16, 1
      %p39 = por %p37, %p38
      %p41 = scmp.ne.s32.totalorder %s24, %s40
      %p42 = scmp.eq.s32.totalorder %s16, 0
      %p43 = por %p41, %p42
      %s44 = ssub.s32 %s10, %s17
      %p45 = scmp.eq.s32.totalorder %s44, 0
      %s47 = sadd.s32 %s46, 1
      %s48 = scalar_select %p45, %s46, %s47
      %p51 = pneg %p45
      %p52 = scmp.eq.s32.totalorder %s10, 1
      %p53 = por %p51, %p52
      %p54 = scmp.ne.s32.totalorder %s46, %s49
      %p55 = scmp.eq.s32.totalorder %s10, 0
      %p56 = por %p54, %p55
      %p57 = scmp.ne.s32.totalorder %s46, %s49
      %p58 = scmp.eq.s32.totalorder %s15, 1
      %p59 = por %p57, %p58
      %p60 = scmp.ne.s32.totalorder %s49, %s50
      %p61 = scmp.eq.s32.totalorder %s15, 0
      %p62 = por %p60, %p61
      %p63 = scmp.ne.s32.totalorder %s49, %s50
      %p64 = scmp.eq.s32.totalorder %s16, 1
      %p65 = por %p63, %p64
      %p67 = scmp.ne.s32.totalorder %s50, %s66
      %p68 = scmp.eq.s32.totalorder %s16, 0
      %p69 = por %p67, %p68
      %p70 = scmp.le.s32.totalorder 1, %s10
      %p71 = scmp.lt.s32.totalorder %s10, 3
      %p72 = pnand %p70, %p71
      %p73 = pneg %p72
      // Predicated region
      $region9: #{tpu_custom_call.1} parent=5 // pred_check
        _
      $region10: #{tpu_custom_call.1} parent=5 // pred_check_branch
        %75 = sbr.rel (%p72) target = $region12
      $region11: #{tpu_custom_call.1} parent=5 // pred_region
        %s76 = ssub.s32 %s10, 1
      $region12: #{tpu_custom_call.1} parent=5 // pred_fallthru
        _
      %p77 = scmp.lt.s32.totalorder %s10, 2
      // Predicated region
      $region13: #{tpu_custom_call.1} parent=5 // pred_check
        %p78 = pneg %p77
      $region14: #{tpu_custom_call.1} parent=5 // pred_check_branch
        %80 = sbr.rel (%p78) target = $region16
      $region15: #{tpu_custom_call.1} parent=5 // pred_region
        // Predicated region
        $region17: #{tpu_custom_call.1} parent=15 // pred_check
          %p81 = pneg %p30
        $region18: #{tpu_custom_call.1} parent=15 // pred_check_branch
          %83 = sbr.rel (%p81) target = $region20
        $region19: #{tpu_custom_call.1} parent=15 // pred_region
          %p84 = scmp.lt.s32.totalorder %s10, 1
          %s85 = scalar_select %p84, %s10, 1
          %s86 = smul.addr %s85, 3
          %s87 = smul.addr %s86, 8
          %s88 = scalar_lea.vmem %s0, %s87
        $region20: #{tpu_custom_call.1} parent=15 // pred_fallthru
          _
      $region16: #{tpu_custom_call.1} parent=5 // pred_fallthru
        _
      %p89 = scmp.le.s32.totalorder 1, %s10
      %p90 = scmp.lt.s32.totalorder %s10, 3
      %p91 = pnand %p89, %p90
      %p92 = pneg %p91
      // Predicated region
      $region21: #{tpu_custom_call.1} parent=5 // pred_check
        _
      $region22: #{tpu_custom_call.1} parent=5 // pred_check_branch
        %94 = sbr.rel (%p91) target = $region24
      $region23: #{tpu_custom_call.1} parent=5 // pred_region
        %s95 = ssub.s32 %s10, 1
        %p96 = scmp.lt.s32.totalorder %s15, 1
        %s97 = scalar_select %p96, %s15, 1
        %s98 = smul.addr %s97, 3
        %s99 = smul.addr %s98, 8
        %s100 = scalar_lea.vmem %s0, %s99
        %p101 = pneg %p36
        %p102 = pneg %p33
        %p103 = pneg %p62
        %p104 = pneg %p59
        %s105 = sand.u32 %s49, 1
        %s106 = scalar_lea.sflag [#allocation3], %s105
        %s107 = sand.u32 %s49, 1
        %s108 = smul.addr %s107, 16
        %s109 = scalar_lea.vmem [#allocation2], %s108
        %p110 = scmp.lt.s32.totalorder %s15, 1
        %s111 = scalar_select %p110, %s15, 1
        %s112 = smul.addr %s111, 3
        %s113 = smul.addr %s112, 8
        %s114 = scalar_lea.vmem %s0, %s113
        %v115 = vld [vmem:[%s114] sm:$0xff]
        %v116 = vld [vmem:[%s114 + $0x8] sm:$0xff]
        %v117 = vld [vmem:[%s114 + $0x10] sm:$0x3]
        %v118 = vmul.f32 %v115, 2.0
        %v119 = vmul.f32 %v116, 2.0
        %v120 = vmul.f32 %v117, 2.0
        %vm124 = vcmask 1046528
        %v125 = vrot.slane %v118, 1
        %v126 = vrot.slane %v119, 1
        %v127 = vsel %vm124, %v125, %v126
        %v128 = vrot.slane %v120, 1
        %v129 = vsel %vm124, %v126, %v128
        %v132 = vadd.f32 %v115, %v127
        %v133 = vadd.f32 %v116, %v129
        %vm137 = vcmask 1045504
        %v138 = vrot.slane %v115, 2
        %v139 = vrot.slane %v116, 2
        %v140 = vsel %vm137, %v138, %v139
        %v141 = vrot.slane %v117, 2
        %v142 = vsel %vm137, %v139, %v141
        %v145 = vadd.f32 %v132, %v140
        %v146 = vadd.f32 %v133, %v142
        %149 = vrot.lane.b32.xlu0 %v145, 2
        %v150 = vpop.permute.xlu0 %149
        %151 = vrot.lane.b32.xlu0 %v146, 2
        %v152 = vpop.permute.xlu0 %151
        %v155 = vsub.f32 %v145, %v150
        %v156 = vsub.f32 %v146, %v152
        %157 = vrot.lane.b32.xlu0 %v118, 127
        %v158 = vpop.permute.xlu0 %157
        %159 = vrot.lane.b32.xlu0 %v119, 127
        %v160 = vpop.permute.xlu0 %159
        %161 = vrot.lane.b32.xlu0 %v120, 127
        %v162 = vpop.permute.xlu0 %161
        %v166 = vadd.f32 %v115, %v158
        %v167 = vadd.f32 %v116, %v160
        %v168 = vadd.f32 %v117, %v162
        %169 = vrot.lane.b32.xlu0 %v115, 126
        %v170 = vpop.permute.xlu0 %169
        %171 = vrot.lane.b32.xlu0 %v116, 126
        %v172 = vpop.permute.xlu0 %171
        %173 = vrot.lane.b32.xlu0 %v117, 126
        %v174 = vpop.permute.xlu0 %173
        %v178 = vadd.f32 %v166, %v170
        %v179 = vadd.f32 %v167, %v172
        %v180 = vadd.f32 %v168, %v174
        %vm183 = vcmask 1041408
        %v184 = vrot.slane %v178, 6
        %v185 = vrot.slane %v179, 6
        %v186 = vsel %vm183, %v184, %v185
        %v190 = vsub.f32 %v178, %v184
        %v191 = vsub.f32 %v179, %v186
        %v192 = vsub.f32 %v180, %v185
        %v193 = vmul.f32 %v155, %v155
        %v194 = vmul.f32 %v156, %v156
        %v195 = vmul.f32 %v190, %v190
        %v196 = vmul.f32 %v191, %v191
        %v197 = vmul.f32 %v192, %v192
        %v201 = vrot.slane %v195, 2
        %v202 = vrot.slane %v196, 2
        %v203 = vsel %vm137, %v201, %v202
        %v204 = vrot.slane %v197, 2
        %v205 = vsel %vm137, %v202, %v204
        %206 = vrot.lane.b32.xlu0 %v203, 2
        %v207 = vpop.permute.xlu0 %206
        %208 = vrot.lane.b32.xlu0 %v205, 2
        %v209 = vpop.permute.xlu0 %208
        %v212 = vadd.f32 %v193, %v207
        %v213 = vadd.f32 %v194, %v209
        %v214 = vadd.f32 %v212, 1e-12
        %v215 = vadd.f32 %v213, 1e-12
        %v216 = vrsqrt.pop %v214
        %v217 = vmul.f32 %v214, %v216
        %vm218 = vcmp.eq.f32.partialorder %v214, inf
        %v219 = vsel %vm218, %v214, %v217
        %vm220 = vcmp.eq.f32.partialorder %v214, 0.0
        %v221 = vand.u32 %v214, 2147483648
        %v222 = vsel %vm220, %v221, %v219
        %v223 = vrsqrt.pop %v215
        %v224 = vmul.f32 %v215, %v223
        %vm225 = vcmp.eq.f32.partialorder %v215, inf
        %v226 = vsel %vm225, %v215, %v224
        %vm227 = vcmp.eq.f32.partialorder %v215, 0.0
        %v228 = vand.u32 %v215, 2147483648
        %v229 = vsel %vm227, %v228, %v226
        %v230 = vsub.f32 0.0, %v222
        %v231 = vsub.f32 0.0, %v229
        %v232 = vmul.f32 %v230, 1.442695
        %v233 = vpow.pop %v232
        %v234 = vmul.f32 %v231, 1.442695
        %v235 = vpow.pop %v234
        %v236 = vsub.f32 1.0, %v233
        %v237 = vsub.f32 1.0, %v235
        %240 = vrot.lane.b32.xlu0 %v236, 126
        %v241 = vpop.permute.xlu0 %240
        %242 = vrot.lane.b32.xlu0 %v237, 126
        %v243 = vpop.permute.xlu0 %242
        %vm246 = vcmask 130048
        %247 = vst.msk [vmem:[%s109] sm:$0xff] %vm246, %v241
        %248 = vst.msk [vmem:[%s109 + $0x8] sm:$0xff] %vm246, %v243
        %s249 = sand.u32 %s49, 1
        %s250 = scalar_lea.sflag [#allocation3], %s249
        %s251 = sand.u32 %s49, 1
        %s252 = smul.addr %s251, 16
        %s253 = scalar_lea.vmem [#allocation2], %s252
        // Predicated region
        $region25: #{tpu_custom_call.1} parent=23 // pred_check
          %p254 = pneg %p59
        $region26: #{tpu_custom_call.1} parent=23 // pred_check_branch
          %256 = sbr.rel (%p254) target = $region28
        $region27: #{tpu_custom_call.1} parent=23 // pred_region
          %s258 = ssub.s32 256, 256
          %259 = vsyncadd %s250, %s258
          %s260 = smul.addr %s15, 2
          %s261 = smul.addr %s260, 128
          %s262 = scalar_lea.hbm %s1, %s261
          %s263 = sshll.u32 %s253, 4
          %s264 = int_to_ptr.vmem [resolvable:$true] %s263
          %269 = dma.vmem_to_hbm [thread:$0]  %s264, 256, %s262, %s250, 128, 128, 8
        $region28: #{tpu_custom_call.1} parent=23 // pred_fallthru
          _
      $region24: #{tpu_custom_call.1} parent=5 // pred_fallthru
        _
      %p270 = scmp.le.s32.totalorder 2, %s10
      // Predicated region
      $region29: #{tpu_custom_call.1} parent=5 // pred_check
        %p271 = pneg %p270
      $region30: #{tpu_custom_call.1} parent=5 // pred_check_branch
        %273 = sbr.rel (%p271) target = $region32
      $region31: #{tpu_custom_call.1} parent=5 // pred_region
        %s274 = ssub.s32 %s10, 2
        // Predicated region
        $region33: #{tpu_custom_call.1} parent=31 // pred_check
          %p275 = pneg %p65
        $region34: #{tpu_custom_call.1} parent=31 // pred_check_branch
          %277 = sbr.rel (%p275) target = $region36
        $region35: #{tpu_custom_call.1} parent=31 // pred_region
          %s278 = sand.u32 %s50, 1
          %s279 = scalar_lea.sflag [#allocation3], %s278
          %s280 = sand.u32 %s50, 1
          %s281 = smul.addr %s280, 16
          %s282 = scalar_lea.vmem [#allocation2], %s281
          %283 = dma.done %s279, 256
        $region36: #{tpu_custom_call.1} parent=31 // pred_fallthru
          _
      $region32: #{tpu_custom_call.1} parent=5 // pred_fallthru
        _
    $region6: #{tpu_custom_call.1} parent=1 // loop_footer
      %s14 = sadd.s32 1, %s10
    $region7: #{tpu_custom_call.1} parent=1 // loop_footer_branch
      %9 = sbr.rel target = $region3
    $region8: #{tpu_custom_call.1} parent=1 // loop_exit
      _
    %284 = vsyncpa [#allocation3], 1
    %s285 = scalar_lea.sflag [#allocation3], 1
    %286 = vsyncpa %s285, 1

</llo_original>
